<compile_context>
chip_gen: v7x
topology: tpu7x:2x2x1
jax: 0.10.0
libtpu: 0.0.40
codegen_flags: <defaults>
</compile_context>

<pallas_src>
import jax
import jax.numpy as jnp
from jax.experimental import pallas as pl
from jax.experimental.pallas import tpu as pltpu


def text_encoder_kernel(x_ref, w1_ref, b1_ref, w2_ref, b2_ref, o_ref):
    # In-kernel cast of x to the MXU dtype (bf16): x arrives as f32 over DMA,
    # cast happens on the VPU — avoids a separate wrapper-side astype pass.
    x = x_ref[...].astype(w1_ref.dtype)
    # First linear (bf16 MXU matmul, f32 accumulation) + bias + ReLU (f32 VPU).
    h = jnp.dot(x, w1_ref[...], preferred_element_type=jnp.float32)
    h = jnp.maximum(h + b1_ref[...], 0.0)           # b1_ref is (1, H) -> row broadcast
    # Dropout(p=0.3): eval-mode identity (no-op).
    # Second linear: intermediate back to bf16 for the MXU, accumulate f32.
    o = jnp.dot(h.astype(w2_ref.dtype), w2_ref[...],
                preferred_element_type=jnp.float32)
    o_ref[...] = (o + b2_ref[...]).astype(o_ref.dtype)


def prepare_params(w1, b1, w2, b2, *, compute_dtype=jnp.bfloat16):
    """One-time conversion of TextEncoder params to kernel-ready layout/dtypes.

    Weights are stored [in, out] (transposed vs torch nn.Linear.weight) so the
    kernel computes x @ W + b directly on the MXU. Call this ONCE; pass the
    result to text_encoder() on every call (no per-call casts).
    """
    H = w1.shape[1]
    return (w1.astype(compute_dtype),
            b1.reshape(1, H).astype(jnp.float32),
            w2.astype(compute_dtype),
            b2.reshape(1, H).astype(jnp.float32))


def _batch_tile(B, block_b, min_split):
    """Pick the batch tile: whole batch if small, else >=2 grid steps capped
    at block_b (tile is a multiple of 8 to satisfy the sublane constraint)."""
    if B <= min_split:
        return B                      # single step; full-dim block is always legal
    half = pl.cdiv(B, 2)
    half = ((half + 7) // 8) * 8      # round up to sublane multiple
    return min(block_b, half)


def text_encoder(x, w1c, b1_2d, w2c, b2_2d, *, out_dtype=None,
                 block_b=1024, min_split=128):
    """x: [B, D_in] (f32 or bf16); w1c: [D_in, H] bf16; b1_2d: [1, H] f32;
    w2c: [H, H] bf16; b2_2d: [1, H] f32  ->  [B, H] in out_dtype (default x.dtype)."""
    B, D_in = x.shape
    H = w1c.shape[1]
    out_dtype = x.dtype if out_dtype is None else jnp.dtype(out_dtype)

    tb = _batch_tile(B, block_b, min_split)
    grid = (pl.cdiv(B, tb),)

    # Advisory cost estimate (helps XLA overlap producers with this mem-bound op).
    bytes_accessed = (x.size * x.dtype.itemsize
                      + w1c.size * w1c.dtype.itemsize
                      + w2c.size * w2c.dtype.itemsize
                      + (b1_2d.size + b2_2d.size) * 4
                      + B * H * jnp.dtype(out_dtype).itemsize)
    cost = pl.CostEstimate(flops=2 * B * D_in * H + 2 * B * H * H,
                           transcendentals=0,
                           bytes_accessed=bytes_accessed)

    return pl.pallas_call(
        text_encoder_kernel,
        out_shape=jax.ShapeDtypeStruct((B, H), out_dtype),
        grid_spec=pltpu.PrefetchScalarGridSpec(
            num_scalar_prefetch=0,
            grid=grid,
            in_specs=[
                pl.BlockSpec((tb, D_in), lambda i: (i, 0)),   # x: tiled over batch
                pl.BlockSpec((D_in, H), lambda i: (0, 0)),    # w1: VMEM-resident
                pl.BlockSpec((1, H), lambda i: (0, 0)),       # b1: VMEM-resident
                pl.BlockSpec((H, H), lambda i: (0, 0)),       # w2: VMEM-resident
                pl.BlockSpec((1, H), lambda i: (0, 0)),       # b2: VMEM-resident
            ],
            out_specs=pl.BlockSpec((tb, H), lambda i: (i, 0)),
        ),
        compiler_params=pltpu.CompilerParams(
            dimension_semantics=("parallel",)),   # batch tiles independent -> 2 TCs on v7x
        cost_estimate=cost,
    )(x, w1c, b1_2d, w2c, b2_2d)


def reference(x, w1, b1, w2, b2, compute_dtype=jnp.bfloat16):
    """Same math with the same bf16 casts, f32 accumulation (for tolerance)."""
    xc = x.astype(compute_dtype)
    w1c = w1.astype(compute_dtype)
    w2c = w2.astype(compute_dtype)
    h = jnp.dot(xc, w1c, preferred_element_type=jnp.float32) + b1
    h = jnp.maximum(h, 0.0)
    o = jnp.dot(h.astype(compute_dtype), w2c,
                preferred_element_type=jnp.float32) + b2
    return o


def reference_f32(x, w1, b1, w2, b2):
    h = jnp.maximum(x @ w1 + b1, 0.0)
    return h @ w2 + b2


if __name__ == "__main__":
    INPUT_DIM = 512   # matches nn.Linear(input_dim=512, hidden_dim=256)
    HIDDEN_DIM = 256
    BATCH = 8

    key = jax.random.PRNGKey(0)
    kx, k1, kb1, k2, kb2, kx2 = jax.random.split(key, 6)

    # Deterministic synthetic parameters (shapes from TextEncoder.__init__).
    x = jax.random.normal(kx, (BATCH, INPUT_DIM), dtype=jnp.float32)
    w1 = jax.random.normal(k1, (INPUT_DIM, HIDDEN_DIM), dtype=jnp.float32) * 0.02
    b1 = jax.random.normal(kb1, (HIDDEN_DIM,), dtype=jnp.float32) * 0.01
    w2 = jax.random.normal(k2, (HIDDEN_DIM, HIDDEN_DIM), dtype=jnp.float32) * 0.02
    b2 = jax.random.normal(kb2, (HIDDEN_DIM,), dtype=jnp.float32) * 0.01

    # One-time parameter conversion (outside the hot path).
    params = prepare_params(w1, b1, w2, b2)

    # Small batch (single grid step), f32 output.
    out = jax.block_until_ready(text_encoder(x, *params))
    assert out.shape == (BATCH, HIDDEN_DIM)
    ref = reference(x, w1, b1, w2, b2)
    assert jnp.allclose(out, ref.astype(out.dtype), atol=1e-2, rtol=1e-2), \
        "mismatch vs bf16 reference"
    ref32 = reference_f32(x, w1, b1, w2, b2)
    assert jnp.allclose(out, ref32, atol=5e-2, rtol=5e-2), "mismatch vs f32 reference"

    # Larger batch exercising the tiled grid (>=2 steps, partial last tile).
    BIG = 500
    x_big = jax.random.normal(kx2, (BIG, INPUT_DIM), dtype=jnp.float32)
    out_big = jax.block_until_ready(text_encoder(x_big, *params))
    ref_big = reference(x_big, w1, b1, w2, b2)
    assert out_big.shape == (BIG, HIDDEN_DIM)
    assert jnp.allclose(out_big, ref_big.astype(out_big.dtype),
                        atol=1e-2, rtol=1e-2), "mismatch (tiled)"

    # bf16 output path (halved store traffic for consumers that accept bf16).
    out_bf16 = jax.block_until_ready(
        text_encoder(x_big, *params, out_dtype=jnp.bfloat16))
    assert out_bf16.dtype == jnp.bfloat16
    assert jnp.allclose(out_bf16.astype(jnp.float32), ref_big,
                        atol=5e-2, rtol=5e-2), "mismatch (bf16 out)"

    print("KERNEL_OK")
</pallas_src>

<mosaic_0001>
module attributes {stable_mosaic.version = 11 : i64} {
  func.func @text_encoder_kernel(%arg0: i32, %arg1: memref<8x512xf32, #tpu.memory_space<vmem>>, %arg2: memref<512x256xbf16, #tpu.memory_space<vmem>>, %arg3: memref<1x256xf32, #tpu.memory_space<vmem>>, %arg4: memref<256x256xbf16, #tpu.memory_space<vmem>>, %arg5: memref<1x256xf32, #tpu.memory_space<vmem>>, %arg6: memref<8x256xf32, #tpu.memory_space<vmem>>) attributes {dimension_semantics = [#tpu.dimension_semantics<parallel>], iteration_bounds = array<i64: 1>, scalar_prefetch = 0 : i64, scratch_operands = 0 : i64, tpu.core_type = #tpu.core_type<tc>, window_params = [{transform_indices = @transform_0, window_bounds = array<i64: 8, 512>}, {pipeline_mode = #tpu.pipeline_mode<synchronous>, transform_indices = @transform_1, window_bounds = array<i64: 512, 256>}, {pipeline_mode = #tpu.pipeline_mode<synchronous>, transform_indices = @transform_2, window_bounds = array<i64: 1, 256>}, {pipeline_mode = #tpu.pipeline_mode<synchronous>, transform_indices = @transform_3, window_bounds = array<i64: 256, 256>}, {pipeline_mode = #tpu.pipeline_mode<synchronous>, transform_indices = @transform_4, window_bounds = array<i64: 1, 256>}, {transform_indices = @transform_5, window_bounds = array<i64: 8, 256>}]} {
    %c0 = arith.constant 0 : index
    %c0_0 = arith.constant 0 : index
    %0 = vector.load %arg1[%c0, %c0_0] : memref<8x512xf32, #tpu.memory_space<vmem>>, vector<8x512xf32>
    %1 = arith.truncf %0 : vector<8x512xf32> to vector<8x512xbf16>
    %c0_1 = arith.constant 0 : index
    %c0_2 = arith.constant 0 : index
    %2 = vector.load %arg2[%c0_1, %c0_2] : memref<512x256xbf16, #tpu.memory_space<vmem>>, vector<512x256xbf16>
    %cst = arith.constant dense<0.000000e+00> : vector<8x256xf32>
    %3 = tpu.matmul %1, %2, %cst {dimension_numbers = #tpu.dot_dimension_numbers<[1], [0], [0], [1], [0, 0, 1, 1], [], []>} : vector<8x512xbf16>, vector<512x256xbf16>, vector<8x256xf32> -> vector<8x256xf32>
    %c0_3 = arith.constant 0 : index
    %c0_4 = arith.constant 0 : index
    %4 = vector.load %arg3[%c0_3, %c0_4] : memref<1x256xf32, #tpu.memory_space<vmem>>, vector<1x256xf32>
    %5 = vector.broadcast %4 : vector<1x256xf32> to vector<8x256xf32>
    %6 = arith.addf %3, %5 : vector<8x256xf32>
    %cst_5 = arith.constant 0.000000e+00 : f32
    %7 = vector.broadcast %cst_5 : f32 to vector<8x256xf32>
    %8 = arith.maximumf %6, %7 : vector<8x256xf32>
    %9 = arith.truncf %8 : vector<8x256xf32> to vector<8x256xbf16>
    %c0_6 = arith.constant 0 : index
    %c0_7 = arith.constant 0 : index
    %10 = vector.load %arg4[%c0_6, %c0_7] : memref<256x256xbf16, #tpu.memory_space<vmem>>, vector<256x256xbf16>
    %cst_8 = arith.constant dense<0.000000e+00> : vector<8x256xf32>
    %11 = tpu.matmul %9, %10, %cst_8 {dimension_numbers = #tpu.dot_dimension_numbers<[1], [0], [0], [1], [0, 0, 1, 1], [], []>} : vector<8x256xbf16>, vector<256x256xbf16>, vector<8x256xf32> -> vector<8x256xf32>
    %c0_9 = arith.constant 0 : index
    %c0_10 = arith.constant 0 : index
    %12 = vector.load %arg5[%c0_9, %c0_10] : memref<1x256xf32, #tpu.memory_space<vmem>>, vector<1x256xf32>
    %13 = vector.broadcast %12 : vector<1x256xf32> to vector<8x256xf32>
    %14 = arith.addf %11, %13 : vector<8x256xf32>
    %c0_11 = arith.constant 0 : index
    %c0_12 = arith.constant 0 : index
    %15 = vector.load %arg6[%c0_11, %c0_12] : memref<8x256xf32, #tpu.memory_space<vmem>>, vector<8x256xf32>
    tpu.vector_store %arg6[%c0_11, %c0_12], %14 {strides = array<i32>} : memref<8x256xf32, #tpu.memory_space<vmem>>, vector<8x256xf32>,
    return
  }
  func.func @transform_0(%arg0: i32) -> (i32, i32) {
    %c0_i32 = arith.constant 0 : i32
    %c0_i32_0 = arith.constant 0 : i32
    return %arg0, %c0_i32 : i32, i32
  }
  func.func @transform_1(%arg0: i32) -> (i32, i32) {
    %c0_i32 = arith.constant 0 : i32
    %c0_i32_0 = arith.constant 0 : i32
    %c0_i32_1 = arith.constant 0 : i32
    return %c0_i32, %c0_i32_0 : i32, i32
  }
  func.func @transform_2(%arg0: i32) -> (i32, i32) {
    %c0_i32 = arith.constant 0 : i32
    %c0_i32_0 = arith.constant 0 : i32
    %c0_i32_1 = arith.constant 0 : i32
    return %c0_i32, %c0_i32_0 : i32, i32
  }
  func.func @transform_3(%arg0: i32) -> (i32, i32) {
    %c0_i32 = arith.constant 0 : i32
    %c0_i32_0 = arith.constant 0 : i32
    %c0_i32_1 = arith.constant 0 : i32
    return %c0_i32, %c0_i32_0 : i32, i32
  }
  func.func @transform_4(%arg0: i32) -> (i32, i32) {
    %c0_i32 = arith.constant 0 : i32
    %c0_i32_0 = arith.constant 0 : i32
    %c0_i32_1 = arith.constant 0 : i32
    return %c0_i32, %c0_i32_0 : i32, i32
  }
  func.func @transform_5(%arg0: i32) -> (i32, i32) {
    %c0_i32 = arith.constant 0 : i32
    %c0_i32_0 = arith.constant 0 : i32
    return %arg0, %c0_i32 : i32, i32
  }
}

</mosaic_0001>

<llo_original>
// kernel: tpu_custom_call.1
$region0: #{tpu_custom_call.1}
  #allocation0 [shape = 'u32[]', space=smem, size = 0x4, offset = 0x4, fixed_abs, tag = 'smem constant byte address 0x4 - core index']
  #allocation1 [shape = 'u32[144,128]{1,0:T(1,128)}', space=vmem, size = 0x12000, scoped, tag = 'internal scratch']
  %s0 = inlined_call_operand.hbm [shape: f32[8,512], index: 0, kind: input, shape index: {}]
  %s1 = inlined_call_operand.hbm [shape: bf16[512,256], index: 1, kind: input, shape index: {}]
  %s2 = inlined_call_operand.vmem [shape: f32[1,256], index: 2, kind: input, shape index: {}]
  %s3 = inlined_call_operand.hbm [shape: bf16[256,256], index: 3, kind: input, shape index: {}]
  %s4 = inlined_call_operand.vmem [shape: f32[1,256], index: 4, kind: input, shape index: {}]
  %s5 = inlined_call_operand.hbm [shape: f32[8,256], index: 5, kind: output, shape index: {}]
  %s6 = sld [smem:[#allocation0]]
  $region42: #{tpu_custom_call.1} parent=0
    _
  %s8 = ssub.s32 1, %s6
  %s9 = scalar_select 0, %s8, %s6
  $region1: #{tpu_custom_call.1} parent=0
    #allocation2 [shape = 'u8[16384]{0}', space=vmem, size = 0x4000, scoped, tag = 'input window, operand 0, single buffered']
    #allocation3 [shape = 's32[1]{0}', space=sflag, size = 0x4, scoped, tag = 'scoped memory for tpu_custom_call.1']
    #allocation4 [shape = 's32[1]{0}', space=sflag, size = 0x4, scoped, tag = 'scoped memory for tpu_custom_call.1']
    #allocation5 [shape = 'u8[262144]{0}', space=vmem, size = 0x40000, scoped, tag = 'input window, operand 1, single buffered']
    #allocation6 [shape = 's32[1]{0}', space=sflag, size = 0x4, scoped, tag = 'scoped memory for tpu_custom_call.1']
    #allocation7 [shape = 'u8[131072]{0}', space=vmem, size = 0x20000, scoped, tag = 'input window, operand 3, single buffered']
    #allocation8 [shape = 'u8[8192]{0}', space=vmem, size = 0x2000, scoped, tag = 'output window, operand 0, single buffered']
    %10 = vsyncpa [#allocation3], 0
    %11 = vsyncpa [#allocation6], 0
    %12 = vsyncpa [#allocation4], 0
    // Predicated region
    $region2: #{tpu_custom_call.1} parent=1 // pred_check
      _
    $region3: #{tpu_custom_call.1} parent=1 // pred_check_branch
      %14 = sbr.rel (0) target = $region5
    $region4: #{tpu_custom_call.1} parent=1 // pred_region
      %s16 = ssub.s32 512, 512
      %17 = vsyncadd [#allocation3], %s16
      %s19 = sshll.u32 [#allocation2], 4
      %s20 = int_to_ptr.vmem [resolvable:$true] %s19
      %22 = dma.hbm_to_vmem [thread:$0]  %s0, 512, %s20, [#allocation3]
    $region5: #{tpu_custom_call.1} parent=1 // pred_fallthru
      _
    // Predicated region
    $region6: #{tpu_custom_call.1} parent=1 // pred_check
      _
    $region7: #{tpu_custom_call.1} parent=1 // pred_check_branch
      %24 = sbr.rel (0) target = $region9
    $region8: #{tpu_custom_call.1} parent=1 // pred_region
      %s26 = ssub.s32 8192, 8192
      %27 = vsyncadd [#allocation6], %s26
      %s28 = sshll.u32 [#allocation5], 4
      %s29 = int_to_ptr.vmem [resolvable:$true] %s28
      %34 = dma.hbm_to_vmem [thread:$0]  %s1, 8192, %s29, [#allocation6], 128, 128, 8
    $region9: #{tpu_custom_call.1} parent=1 // pred_fallthru
      _
    // Predicated region
    $region10: #{tpu_custom_call.1} parent=1 // pred_check
      _
    $region11: #{tpu_custom_call.1} parent=1 // pred_check_branch
      %36 = sbr.rel (0) target = $region13
    $region12: #{tpu_custom_call.1} parent=1 // pred_region
      _
    $region13: #{tpu_custom_call.1} parent=1 // pred_fallthru
      _
    // Predicated region
    $region14: #{tpu_custom_call.1} parent=1 // pred_check
      _
    $region15: #{tpu_custom_call.1} parent=1 // pred_check_branch
      %38 = sbr.rel (0) target = $region17
    $region16: #{tpu_custom_call.1} parent=1 // pred_region
      %s40 = ssub.s32 4096, 4096
      %41 = vsyncadd [#allocation6], %s40
      %s42 = sshll.u32 [#allocation7], 4
      %s43 = int_to_ptr.vmem [resolvable:$true] %s42
      %48 = dma.hbm_to_vmem [thread:$0]  %s3, 4096, %s43, [#allocation6], 128, 128, 8
    $region17: #{tpu_custom_call.1} parent=1 // pred_fallthru
      _
    // Predicated region
    $region18: #{tpu_custom_call.1} parent=1 // pred_check
      _
    $region19: #{tpu_custom_call.1} parent=1 // pred_check_branch
      %50 = sbr.rel (0) target = $region21
    $region20: #{tpu_custom_call.1} parent=1 // pred_region
      _
    $region21: #{tpu_custom_call.1} parent=1 // pred_fallthru
      _
    // Predicated region
    $region22: #{tpu_custom_call.1} parent=1 // pred_check
      _
    $region23: #{tpu_custom_call.1} parent=1 // pred_check_branch
      %52 = sbr.rel (0) target = $region25
    $region24: #{tpu_custom_call.1} parent=1 // pred_region
      %53 = dma.done [#allocation3], 512
    $region25: #{tpu_custom_call.1} parent=1 // pred_fallthru
      _
    // Predicated region
    $region26: #{tpu_custom_call.1} parent=1 // pred_check
      _
    $region27: #{tpu_custom_call.1} parent=1 // pred_check_branch
      %55 = sbr.rel (0) target = $region29
    $region28: #{tpu_custom_call.1} parent=1 // pred_region
      %56 = dma.done [#allocation6], 8192
    $region29: #{tpu_custom_call.1} parent=1 // pred_fallthru
      _
    // Predicated region
    $region30: #{tpu_custom_call.1} parent=1 // pred_check
      _
    $region31: #{tpu_custom_call.1} parent=1 // pred_check_branch
      %58 = sbr.rel (0) target = $region33
    $region32: #{tpu_custom_call.1} parent=1 // pred_region
      %59 = dma.done [#allocation6], 4096
    $region33: #{tpu_custom_call.1} parent=1 // pred_fallthru
      _
    %v60 = vld [vmem:[#allocation2] sm:$0xff]
    %v61 = vld [vmem:[#allocation2 + $0x8] sm:$0xff]
    %v62 = vld [vmem:[#allocation2 + $0x10] sm:$0xff]
    %v63 = vld [vmem:[#allocation2 + $0x18] sm:$0xff]
    %v64 = vpack.c.bf16 %v60, %v60
    %v65 = vpack.c.bf16 %v61, %v61
    %v66 = vpack.c.bf16 %v62, %v62
    %v67 = vpack.c.bf16 %v63, %v63
    %v68 = vld [vmem:[#allocation5] sm:$0xff]
    %v69 = vld [vmem:[#allocation5 + $0x8] sm:$0xff]
    %v70 = vld [vmem:[#allocation5 + $0x10] sm:$0xff]
    %v71 = vld [vmem:[#allocation5 + $0x18] sm:$0xff]
    %v72 = vld [vmem:[#allocation5 + $0x20] sm:$0xff]
    %v73 = vld [vmem:[#allocation5 + $0x28] sm:$0xff]
    %v74 = vld [vmem:[#allocation5 + $0x30] sm:$0xff]
    %v75 = vld [vmem:[#allocation5 + $0x38] sm:$0xff]
    %v76 = vld [vmem:[#allocation5 + $0x40] sm:$0xff]
    %v77 = vld [vmem:[#allocation5 + $0x48] sm:$0xff]
    %v78 = vld [vmem:[#allocation5 + $0x50] sm:$0xff]
    %v79 = vld [vmem:[#allocation5 + $0x58] sm:$0xff]
    %v80 = vld [vmem:[#allocation5 + $0x60] sm:$0xff]
    %v81 = vld [vmem:[#allocation5 + $0x68] sm:$0xff]
    %v82 = vld [vmem:[#allocation5 + $0x70] sm:$0xff]
    %v83 = vld [vmem:[#allocation5 + $0x78] sm:$0xff]
    %v84 = vld [vmem:[#allocation5 + $0x80] sm:$0xff]
    %v85 = vld [vmem:[#allocation5 + $0x88] sm:$0xff]
    %v86 = vld [vmem:[#allocation5 + $0x90] sm:$0xff]
    %v87 = vld [vmem:[#allocation5 + $0x98] sm:$0xff]
    %v88 = vld [vmem:[#allocation5 + $0xa0] sm:$0xff]
    %v89 = vld [vmem:[#allocation5 + $0xa8] sm:$0xff]
    %v90 = vld [vmem:[#allocation5 + $0xb0] sm:$0xff]
    %v91 = vld [vmem:[#allocation5 + $0xb8] sm:$0xff]
    %v92 = vld [vmem:[#allocation5 + $0xc0] sm:$0xff]
    %v93 = vld [vmem:[#allocation5 + $0xc8] sm:$0xff]
    %v94 = vld [vmem:[#allocation5 + $0xd0] sm:$0xff]
    %v95 = vld [vmem:[#allocation5 + $0xd8] sm:$0xff]
    %v96 = vld [vmem:[#allocation5 + $0xe0] sm:$0xff]
    %v97 = vld [vmem:[#allocation5 + $0xe8] sm:$0xff]
    %v98 = vld [vmem:[#allocation5 + $0xf0] sm:$0xff]
    %v99 = vld [vmem:[#allocation5 + $0xf8] sm:$0xff]
    %v100 = vld [vmem:[#allocation5 + $0x100] sm:$0xff]
    %v101 = vld [vmem:[#allocation5 + $0x108] sm:$0xff]
    %v102 = vld [vmem:[#allocation5 + $0x110] sm:$0xff]
    %v103 = vld [vmem:[#allocation5 + $0x118] sm:$0xff]
    %v104 = vld [vmem:[#allocation5 + $0x120] sm:$0xff]
    %v105 = vld [vmem:[#allocation5 + $0x128] sm:$0xff]
    %v106 = vld [vmem:[#allocation5 + $0x130] sm:$0xff]
    %v107 = vld [vmem:[#allocation5 + $0x138] sm:$0xff]
    %v108 = vld [vmem:[#allocation5 + $0x140] sm:$0xff]
    %v109 = vld [vmem:[#allocation5 + $0x148] sm:$0xff]
    %v110 = vld [vmem:[#allocation5 + $0x150] sm:$0xff]
    %v111 = vld [vmem:[#allocation5 + $0x158] sm:$0xff]
    %v112 = vld [vmem:[#allocation5 + $0x160] sm:$0xff]
    %v113 = vld [vmem:[#allocation5 + $0x168] sm:$0xff]
    %v114 = vld [vmem:[#allocation5 + $0x170] sm:$0xff]
    %v115 = vld [vmem:[#allocation5 + $0x178] sm:$0xff]
    %v116 = vld [vmem:[#allocation5 + $0x180] sm:$0xff]
    %v117 = vld [vmem:[#allocation5 + $0x188] sm:$0xff]
    %v118 = vld [vmem:[#allocation5 + $0x190] sm:$0xff]
    %v119 = vld [vmem:[#allocation5 + $0x198] sm:$0xff]
    %v120 = vld [vmem:[#allocation5 + $0x1a0] sm:$0xff]
    %v121 = vld [vmem:[#allocation5 + $0x1a8] sm:$0xff]
    %v122 = vld [vmem:[#allocation5 + $0x1b0] sm:$0xff]
    %v123 = vld [vmem:[#allocation5 + $0x1b8] sm:$0xff]
    %v124 = vld [vmem:[#allocation5 + $0x1c0] sm:$0xff]
    %v125 = vld [vmem:[#allocation5 + $0x1c8] sm:$0xff]
    %v126 = vld [vmem:[#allocation5 + $0x1d0] sm:$0xff]
    %v127 = vld [vmem:[#allocation5 + $0x1d8] sm:$0xff]
    %v128 = vld [vmem:[#allocation5 + $0x1e0] sm:$0xff]
    %v129 = vld [vmem:[#allocation5 + $0x1e8] sm:$0xff]
    %v130 = vld [vmem:[#allocation5 + $0x1f0] sm:$0xff]
    %v131 = vld [vmem:[#allocation5 + $0x1f8] sm:$0xff]
    %v132 = vld [vmem:[%s2] sm:$0x3]
    %v134 = vlaneseq
    %v135 = vshrl.u32 %v134, 7
    %v136 = vsub.s32 0, %v135
    %v137 = vrot.slane %v132, %v136
    %v138 = vlaneseq
    %v139 = vshrl.u32 %v138, 7
    %v140 = vsub.s32 1, %v139
    %v141 = vrot.slane %v132, %v140
    %v208 = vunpack.c.l.b16 %v68
    %v209 = vunpack.c.h.b16 %v68
    %v210 = vunpack.c.l.b16 %v69
    %v211 = vunpack.c.h.b16 %v69
    %v212 = vunpack.c.l.b16 %v70
    %v213 = vunpack.c.h.b16 %v70
    %v214 = vunpack.c.l.b16 %v71
    %v215 = vunpack.c.h.b16 %v71
    %v216 = vunpack.c.l.b16 %v72
    %v217 = vunpack.c.h.b16 %v72
    %v218 = vunpack.c.l.b16 %v73
    %v219 = vunpack.c.h.b16 %v73
    %v220 = vunpack.c.l.b16 %v74
    %v221 = vunpack.c.h.b16 %v74
    %v222 = vunpack.c.l.b16 %v75
    %v223 = vunpack.c.h.b16 %v75
    %v224 = vunpack.c.l.b16 %v76
    %v225 = vunpack.c.h.b16 %v76
    %v226 = vunpack.c.l.b16 %v77
    %v227 = vunpack.c.h.b16 %v77
    %v228 = vunpack.c.l.b16 %v78
    %v229 = vunpack.c.h.b16 %v78
    %v230 = vunpack.c.l.b16 %v79
    %v231 = vunpack.c.h.b16 %v79
    %v232 = vunpack.c.l.b16 %v80
    %v233 = vunpack.c.h.b16 %v80
    %v234 = vunpack.c.l.b16 %v81
    %v235 = vunpack.c.h.b16 %v81
    %v236 = vunpack.c.l.b16 %v82
    %v237 = vunpack.c.h.b16 %v82
    %v238 = vunpack.c.l.b16 %v83
    %v239 = vunpack.c.h.b16 %v83
    %v240 = vunpack.c.l.b16 %v84
    %v241 = vunpack.c.h.b16 %v84
    %v242 = vunpack.c.l.b16 %v85
    %v243 = vunpack.c.h.b16 %v85
    %v244 = vunpack.c.l.b16 %v86
    %v245 = vunpack.c.h.b16 %v86
    %v246 = vunpack.c.l.b16 %v87
    %v247 = vunpack.c.h.b16 %v87
    %v248 = vunpack.c.l.b16 %v88
    %v249 = vunpack.c.h.b16 %v88
    %v250 = vunpack.c.l.b16 %v89
    %v251 = vunpack.c.h.b16 %v89
    %v252 = vunpack.c.l.b16 %v90
    %v253 = vunpack.c.h.b16 %v90
    %v254 = vunpack.c.l.b16 %v91
    %v255 = vunpack.c.h.b16 %v91
    %v256 = vunpack.c.l.b16 %v92
    %v257 = vunpack.c.h.b16 %v92
    %v258 = vunpack.c.l.b16 %v93
    %v259 = vunpack.c.h.b16 %v93
    %v260 = vunpack.c.l.b16 %v94
    %v261 = vunpack.c.h.b16 %v94
    %v262 = vunpack.c.l.b16 %v95
    %v263 = vunpack.c.h.b16 %v95
    %v264 = vunpack.c.l.b16 %v96
    %v265 = vunpack.c.h.b16 %v96
    %v266 = vunpack.c.l.b16 %v97
    %v267 = vunpack.c.h.b16 %v97
    %v268 = vunpack.c.l.b16 %v98
    %v269 = vunpack.c.h.b16 %v98
    %v270 = vunpack.c.l.b16 %v99
    %v271 = vunpack.c.h.b16 %v99
    %v272 = vunpack.c.l.b16 %v100
    %v273 = vunpack.c.h.b16 %v100
    %v274 = vunpack.c.l.b16 %v101
    %v275 = vunpack.c.h.b16 %v101
    %v276 = vunpack.c.l.b16 %v102
    %v277 = vunpack.c.h.b16 %v102
    %v278 = vunpack.c.l.b16 %v103
    %v279 = vunpack.c.h.b16 %v103
    %v280 = vunpack.c.l.b16 %v104
    %v281 = vunpack.c.h.b16 %v104
    %v282 = vunpack.c.l.b16 %v105
    %v283 = vunpack.c.h.b16 %v105
    %v284 = vunpack.c.l.b16 %v106
    %v285 = vunpack.c.h.b16 %v106
    %v286 = vunpack.c.l.b16 %v107
    %v287 = vunpack.c.h.b16 %v107
    %v288 = vunpack.c.l.b16 %v108
    %v289 = vunpack.c.h.b16 %v108
    %v290 = vunpack.c.l.b16 %v109
    %v291 = vunpack.c.h.b16 %v109
    %v292 = vunpack.c.l.b16 %v110
    %v293 = vunpack.c.h.b16 %v110
    %v294 = vunpack.c.l.b16 %v111
    %v295 = vunpack.c.h.b16 %v111
    %v296 = vunpack.c.l.b16 %v112
    %v297 = vunpack.c.h.b16 %v112
    %v298 = vunpack.c.l.b16 %v113
    %v299 = vunpack.c.h.b16 %v113
    %v300 = vunpack.c.l.b16 %v114
    %v301 = vunpack.c.h.b16 %v114
    %v302 = vunpack.c.l.b16 %v115
    %v303 = vunpack.c.h.b16 %v115
    %v304 = vunpack.c.l.b16 %v116
    %v305 = vunpack.c.h.b16 %v116
    %v306 = vunpack.c.l.b16 %v117
    %v307 = vunpack.c.h.b16 %v117
    %v308 = vunpack.c.l.b16 %v118
    %v309 = vunpack.c.h.b16 %v118
    %v310 = vunpack.c.l.b16 %v119
    %v311 = vunpack.c.h.b16 %v119
    %v312 = vunpack.c.l.b16 %v120
    %v313 = vunpack.c.h.b16 %v120
    %v314 = vunpack.c.l.b16 %v121
    %v315 = vunpack.c.h.b16 %v121
    %v316 = vunpack.c.l.b16 %v122
    %v317 = vunpack.c.h.b16 %v122
    %v318 = vunpack.c.l.b16 %v123
    %v319 = vunpack.c.h.b16 %v123
    %v320 = vunpack.c.l.b16 %v124
    %v321 = vunpack.c.h.b16 %v124
    %v322 = vunpack.c.l.b16 %v125
    %v323 = vunpack.c.h.b16 %v125
    %v324 = vunpack.c.l.b16 %v126
    %v325 = vunpack.c.h.b16 %v126
    %v326 = vunpack.c.l.b16 %v127
    %v327 = vunpack.c.h.b16 %v127
    %v328 = vunpack.c.l.b16 %v128
    %v329 = vunpack.c.h.b16 %v128
    %v330 = vunpack.c.l.b16 %v129
    %v331 = vunpack.c.h.b16 %v129
    %v332 = vunpack.c.l.b16 %v130
    %v333 = vunpack.c.h.b16 %v130
    %v334 = vunpack.c.l.b16 %v131
    %v335 = vunpack.c.h.b16 %v131
    %v336 = vpack.c.b16 %v210, %v208
    %v337 = vpack.c.b16 %v211, %v209
    %v338 = vpack.c.b16 %v214, %v212
    %v339 = vpack.c.b16 %v215, %v213
    %v340 = vpack.c.b16 %v218, %v216
    %v341 = vpack.c.b16 %v219, %v217
    %v342 = vpack.c.b16 %v222, %v220
    %v343 = vpack.c.b16 %v223, %v221
    %v344 = vpack.c.b16 %v226, %v224
    %v345 = vpack.c.b16 %v227, %v225
    %v346 = vpack.c.b16 %v230, %v228
    %v347 = vpack.c.b16 %v231, %v229
    %v348 = vpack.c.b16 %v234, %v232
    %v349 = vpack.c.b16 %v235, %v233
    %v350 = vpack.c.b16 %v238, %v236
    %v351 = vpack.c.b16 %v239, %v237
    %v352 = vpack.c.b16 %v242, %v240
    %v353 = vpack.c.b16 %v243, %v241
    %v354 = vpack.c.b16 %v246, %v244
    %v355 = vpack.c.b16 %v247, %v245
    %v356 = vpack.c.b16 %v250, %v248
    %v357 = vpack.c.b16 %v251, %v249
    %v358 = vpack.c.b16 %v254, %v252
    %v359 = vpack.c.b16 %v255, %v253
    %v360 = vpack.c.b16 %v258, %v256
    %v361 = vpack.c.b16 %v259, %v257
    %v362 = vpack.c.b16 %v262, %v260
    %v363 = vpack.c.b16 %v263, %v261
    %v364 = vpack.c.b16 %v266, %v264
    %v365 = vpack.c.b16 %v267, %v265
    %v366 = vpack.c.b16 %v270, %v268
    %v367 = vpack.c.b16 %v271, %v269
    %v368 = vpack.c.b16 %v274, %v272
    %v369 = vpack.c.b16 %v275, %v273
    %v370 = vpack.c.b16 %v278, %v276
    %v371 = vpack.c.b16 %v279, %v277
    %v372 = vpack.c.b16 %v282, %v280
    %v373 = vpack.c.b16 %v283, %v281
    %v374 = vpack.c.b16 %v286, %v284
    %v375 = vpack.c.b16 %v287, %v285
    %v376 = vpack.c.b16 %v290, %v288
    %v377 = vpack.c.b16 %v291, %v289
    %v378 = vpack.c.b16 %v294, %v292
    %v379 = vpack.c.b16 %v295, %v293
    %v380 = vpack.c.b16 %v298, %v296
    %v381 = vpack.c.b16 %v299, %v297
    %v382 = vpack.c.b16 %v302, %v300
    %v383 = vpack.c.b16 %v303, %v301
    %v384 = vpack.c.b16 %v306, %v304
    %v385 = vpack.c.b16 %v307, %v305
    %v386 = vpack.c.b16 %v310, %v308
    %v387 = vpack.c.b16 %v311, %v309
    %v388 = vpack.c.b16 %v314, %v312
    %v389 = vpack.c.b16 %v315, %v313
    %v390 = vpack.c.b16 %v318, %v316
    %v391 = vpack.c.b16 %v319, %v317
    %v392 = vpack.c.b16 %v322, %v320
    %v393 = vpack.c.b16 %v323, %v321
    %v394 = vpack.c.b16 %v326, %v324
    %v395 = vpack.c.b16 %v327, %v325
    %v396 = vpack.c.b16 %v330, %v328
    %v397 = vpack.c.b16 %v331, %v329
    %v398 = vpack.c.b16 %v334, %v332
    %v399 = vpack.c.b16 %v335, %v333
    %464 = vmatprep.subr.bf16.mxu0 %v337
    %465 = vmatpush1.bf16.msra.mxu0 %v336
    %466 = vmatprep.subr.bf16.mxu0 %v339
    %467 = vmatpush1.bf16.msra.mxu0 %v338
    %468 = vmatprep.subr.bf16.mxu0 %v341
    %469 = vmatpush1.bf16.msra.mxu0 %v340
    %470 = vmatprep.subr.bf16.mxu0 %v343
    %471 = vmatpush1.bf16.msra.mxu0 %v342
    %472 = vmatprep.subr.bf16.mxu0 %v345
    %473 = vmatpush1.bf16.msra.mxu0 %v344
    %474 = vmatprep.subr.bf16.mxu0 %v347
    %475 = vmatpush1.bf16.msra.mxu0 %v346
    %476 = vmatprep.subr.bf16.mxu0 %v349
    %477 = vmatpush1.bf16.msra.mxu0 %v348
    %478 = vmatprep.subr.bf16.mxu0 %v351
    %479 = vmatpush1.bf16.msra.mxu0 %v350
    %480 = vmatprep.subr.bf16.mxu0 %v353
    %481 = vmatpush1.bf16.msra.mxu0 %v352
    %482 = vmatprep.subr.bf16.mxu0 %v355
    %483 = vmatpush1.bf16.msra.mxu0 %v354
    %484 = vmatprep.subr.bf16.mxu0 %v357
    %485 = vmatpush1.bf16.msra.mxu0 %v356
    %486 = vmatprep.subr.bf16.mxu0 %v359
    %487 = vmatpush1.bf16.msra.mxu0 %v358
    %488 = vmatprep.subr.bf16.mxu0 %v361
    %489 = vmatpush1.bf16.msra.mxu0 %v360
    %490 = vmatprep.subr.bf16.mxu0 %v363
    %491 = vmatpush1.bf16.msra.mxu0 %v362
    %492 = vmatprep.subr.bf16.mxu0 %v365
    %493 = vmatpush1.bf16.msra.mxu0 %v364
    %494 = vmatprep.subr.bf16.mxu0 %v367
    %495 = vmatpush1.bf16.msra.mxu0 %v366
    %496 = vmatprep.mubr.bf16.mxu0 %v65
    %497 = vmatmul.mubr.bf16.gmra.mrb[0].mxu0 %v64
    %v498 = vpop.f32.mrb[0].mxu0
    %v499 = vadd.f32 %v137, %v498
    %v500 = vpop.f32.mrb[0].mxu0
    %v501 = vadd.f32 %v141, %v500
    %v502 = vpop.f32.mrb[0].mxu0
    %v503 = vpop.f32.mrb[0].mxu0
    %504 = vdwg.mxu0
    %505 = vmatprep.subr.bf16.mxu0 %v369
    %506 = vmatpush1.bf16.msra.mxu0 %v368
    %507 = vmatprep.subr.bf16.mxu0 %v371
    %508 = vmatpush1.bf16.msra.mxu0 %v370
    %509 = vmatprep.subr.bf16.mxu0 %v373
    %510 = vmatpush1.bf16.msra.mxu0 %v372
    %511 = vmatprep.subr.bf16.mxu0 %v375
    %512 = vmatpush1.bf16.msra.mxu0 %v374
    %513 = vmatprep.subr.bf16.mxu0 %v377
    %514 = vmatpush1.bf16.msra.mxu0 %v376
    %515 = vmatprep.subr.bf16.mxu0 %v379
    %516 = vmatpush1.bf16.msra.mxu0 %v378
    %517 = vmatprep.subr.bf16.mxu0 %v381
    %518 = vmatpush1.bf16.msra.mxu0 %v380
    %519 = vmatprep.subr.bf16.mxu0 %v383
    %520 = vmatpush1.bf16.msra.mxu0 %v382
    %521 = vmatprep.subr.bf16.mxu0 %v385
    %522 = vmatpush1.bf16.msra.mxu0 %v384
    %523 = vmatprep.subr.bf16.mxu0 %v387
    %524 = vmatpush1.bf16.msra.mxu0 %v386
    %525 = vmatprep.subr.bf16.mxu0 %v389
    %526 = vmatpush1.bf16.msra.mxu0 %v388
    %527 = vmatprep.subr.bf16.mxu0 %v391
    %528 = vmatpush1.bf16.msra.mxu0 %v390
    %529 = vmatprep.subr.bf16.mxu0 %v393
    %530 = vmatpush1.bf16.msra.mxu0 %v392
    %531 = vmatprep.subr.bf16.mxu0 %v395
    %532 = vmatpush1.bf16.msra.mxu0 %v394
    %533 = vmatprep.subr.bf16.mxu0 %v397
    %534 = vmatpush1.bf16.msra.mxu0 %v396
    %535 = vmatprep.subr.bf16.mxu0 %v399
    %536 = vmatpush1.bf16.msra.mxu0 %v398
    %537 = vmatprep.mubr.bf16.mxu0 %v67
    %538 = vmatmul.mubr.bf16.gmra.mrb[0].mxu0 %v66
    %v539 = vpop.f32.mrb[0].mxu0
    %v540 = vadd.f32 %v499, %v539
    %v541 = vpop.f32.mrb[0].mxu0
    %v542 = vadd.f32 %v501, %v541
    %v543 = vpop.f32.mrb[0].mxu0
    %v544 = vpop.f32.mrb[0].mxu0
    %545 = vdwg.mxu0
    %v546 = vmax.f32 %v540, 0.0
    %v547 = vmax.f32 %v542, 0.0
    %v548 = vpack.c.bf16 %v546, %v546
    %v549 = vpack.c.bf16 %v547, %v547
    %v550 = vld [vmem:[#allocation7] sm:$0xff]
    %v551 = vld [vmem:[#allocation7 + $0x8] sm:$0xff]
    %v552 = vld [vmem:[#allocation7 + $0x10] sm:$0xff]
    %v553 = vld [vmem:[#allocation7 + $0x18] sm:$0xff]
    %v554 = vld [vmem:[#allocation7 + $0x20] sm:$0xff]
    %v555 = vld [vmem:[#allocation7 + $0x28] sm:$0xff]
    %v556 = vld [vmem:[#allocation7 + $0x30] sm:$0xff]
    %v557 = vld [vmem:[#allocation7 + $0x38] sm:$0xff]
    %v558 = vld [vmem:[#allocation7 + $0x40] sm:$0xff]
    %v559 = vld [vmem:[#allocation7 + $0x48] sm:$0xff]
    %v560 = vld [vmem:[#allocation7 + $0x50] sm:$0xff]
    %v561 = vld [vmem:[#allocation7 + $0x58] sm:$0xff]
    %v562 = vld [vmem:[#allocation7 + $0x60] sm:$0xff]
    %v563 = vld [vmem:[#allocation7 + $0x68] sm:$0xff]
    %v564 = vld [vmem:[#allocation7 + $0x70] sm:$0xff]
    %v565 = vld [vmem:[#allocation7 + $0x78] sm:$0xff]
    %v566 = vld [vmem:[#allocation7 + $0x80] sm:$0xff]
    %v567 = vld [vmem:[#allocation7 + $0x88] sm:$0xff]
    %v568 = vld [vmem:[#allocation7 + $0x90] sm:$0xff]
    %v569 = vld [vmem:[#allocation7 + $0x98] sm:$0xff]
    %v570 = vld [vmem:[#allocation7 + $0xa0] sm:$0xff]
    %v571 = vld [vmem:[#allocation7 + $0xa8] sm:$0xff]
    %v572 = vld [vmem:[#allocation7 + $0xb0] sm:$0xff]
    %v573 = vld [vmem:[#allocation7 + $0xb8] sm:$0xff]
    %v574 = vld [vmem:[#allocation7 + $0xc0] sm:$0xff]
    %v575 = vld [vmem:[#allocation7 + $0xc8] sm:$0xff]
    %v576 = vld [vmem:[#allocation7 + $0xd0] sm:$0xff]
    %v577 = vld [vmem:[#allocation7 + $0xd8] sm:$0xff]
    %v578 = vld [vmem:[#allocation7 + $0xe0] sm:$0xff]
    %v579 = vld [vmem:[#allocation7 + $0xe8] sm:$0xff]
    %v580 = vld [vmem:[#allocation7 + $0xf0] sm:$0xff]
    %v581 = vld [vmem:[#allocation7 + $0xf8] sm:$0xff]
    %v582 = vld [vmem:[%s4] sm:$0x3]
    %v584 = vlaneseq
    %v585 = vshrl.u32 %v584, 7
    %v586 = vsub.s32 0, %v585
    %v587 = vrot.slane %v582, %v586
    %v588 = vlaneseq
    %v589 = vshrl.u32 %v588, 7
    %v590 = vsub.s32 1, %v589
    %v591 = vrot.slane %v582, %v590
    %v626 = vunpack.c.l.b16 %v550
    %v627 = vunpack.c.h.b16 %v550
    %v628 = vunpack.c.l.b16 %v551
    %v629 = vunpack.c.h.b16 %v551
    %v630 = vunpack.c.l.b16 %v552
    %v631 = vunpack.c.h.b16 %v552
    %v632 = vunpack.c.l.b16 %v553
    %v633 = vunpack.c.h.b16 %v553
    %v634 = vunpack.c.l.b16 %v554
    %v635 = vunpack.c.h.b16 %v554
    %v636 = vunpack.c.l.b16 %v555
    %v637 = vunpack.c.h.b16 %v555
    %v638 = vunpack.c.l.b16 %v556
    %v639 = vunpack.c.h.b16 %v556
    %v640 = vunpack.c.l.b16 %v557
    %v641 = vunpack.c.h.b16 %v557
    %v642 = vunpack.c.l.b16 %v558
    %v643 = vunpack.c.h.b16 %v558
    %v644 = vunpack.c.l.b16 %v559
    %v645 = vunpack.c.h.b16 %v559
    %v646 = vunpack.c.l.b16 %v560
    %v647 = vunpack.c.h.b16 %v560
    %v648 = vunpack.c.l.b16 %v561
    %v649 = vunpack.c.h.b16 %v561
    %v650 = vunpack.c.l.b16 %v562
    %v651 = vunpack.c.h.b16 %v562
    %v652 = vunpack.c.l.b16 %v563
    %v653 = vunpack.c.h.b16 %v563
    %v654 = vunpack.c.l.b16 %v564
    %v655 = vunpack.c.h.b16 %v564
    %v656 = vunpack.c.l.b16 %v565
    %v657 = vunpack.c.h.b16 %v565
    %v658 = vunpack.c.l.b16 %v566
    %v659 = vunpack.c.h.b16 %v566
    %v660 = vunpack.c.l.b16 %v567
    %v661 = vunpack.c.h.b16 %v567
    %v662 = vunpack.c.l.b16 %v568
    %v663 = vunpack.c.h.b16 %v568
    %v664 = vunpack.c.l.b16 %v569
    %v665 = vunpack.c.h.b16 %v569
    %v666 = vunpack.c.l.b16 %v570
    %v667 = vunpack.c.h.b16 %v570
    %v668 = vunpack.c.l.b16 %v571
    %v669 = vunpack.c.h.b16 %v571
    %v670 = vunpack.c.l.b16 %v572
    %v671 = vunpack.c.h.b16 %v572
    %v672 = vunpack.c.l.b16 %v573
    %v673 = vunpack.c.h.b16 %v573
    %v674 = vunpack.c.l.b16 %v574
    %v675 = vunpack.c.h.b16 %v574
    %v676 = vunpack.c.l.b16 %v575
    %v677 = vunpack.c.h.b16 %v575
    %v678 = vunpack.c.l.b16 %v576
    %v679 = vunpack.c.h.b16 %v576
    %v680 = vunpack.c.l.b16 %v577
    %v681 = vunpack.c.h.b16 %v577
    %v682 = vunpack.c.l.b16 %v578
    %v683 = vunpack.c.h.b16 %v578
    %v684 = vunpack.c.l.b16 %v579
    %v685 = vunpack.c.h.b16 %v579
    %v686 = vunpack.c.l.b16 %v580
    %v687 = vunpack.c.h.b16 %v580
    %v688 = vunpack.c.l.b16 %v581
    %v689 = vunpack.c.h.b16 %v581
    %v690 = vpack.c.b16 %v628, %v626
    %v691 = vpack.c.b16 %v629, %v627
    %v692 = vpack.c.b16 %v632, %v630
    %v693 = vpack.c.b16 %v633, %v631
    %v694 = vpack.c.b16 %v636, %v634
    %v695 = vpack.c.b16 %v637, %v635
    %v696 = vpack.c.b16 %v640, %v638
    %v697 = vpack.c.b16 %v641, %v639
    %v698 = vpack.c.b16 %v644, %v642
    %v699 = vpack.c.b16 %v645, %v643
    %v700 = vpack.c.b16 %v648, %v646
    %v701 = vpack.c.b16 %v649, %v647
    %v702 = vpack.c.b16 %v652, %v650
    %v703 = vpack.c.b16 %v653, %v651
    %v704 = vpack.c.b16 %v656, %v654
    %v705 = vpack.c.b16 %v657, %v655
    %v706 = vpack.c.b16 %v660, %v658
    %v707 = vpack.c.b16 %v661, %v659
    %v708 = vpack.c.b16 %v664, %v662
    %v709 = vpack.c.b16 %v665, %v663
    %v710 = vpack.c.b16 %v668, %v666
    %v711 = vpack.c.b16 %v669, %v667
    %v712 = vpack.c.b16 %v672, %v670
    %v713 = vpack.c.b16 %v673, %v671
    %v714 = vpack.c.b16 %v676, %v674
    %v715 = vpack.c.b16 %v677, %v675
    %v716 = vpack.c.b16 %v680, %v678
    %v717 = vpack.c.b16 %v681, %v679
    %v718 = vpack.c.b16 %v684, %v682
    %v719 = vpack.c.b16 %v685, %v683
    %v720 = vpack.c.b16 %v688, %v686
    %v721 = vpack.c.b16 %v689, %v687
    %754 = vmatprep.subr.bf16.mxu0 %v691
    %755 = vmatpush1.bf16.msra.mxu0 %v690
    %756 = vmatprep.subr.bf16.mxu0 %v693
    %757 = vmatpush1.bf16.msra.mxu0 %v692
    %758 = vmatprep.subr.bf16.mxu0 %v695
    %759 = vmatpush1.bf16.msra.mxu0 %v694
    %760 = vmatprep.subr.bf16.mxu0 %v697
    %761 = vmatpush1.bf16.msra.mxu0 %v696
    %762 = vmatprep.subr.bf16.mxu0 %v699
    %763 = vmatpush1.bf16.msra.mxu0 %v698
    %764 = vmatprep.subr.bf16.mxu0 %v701
    %765 = vmatpush1.bf16.msra.mxu0 %v700
    %766 = vmatprep.subr.bf16.mxu0 %v703
    %767 = vmatpush1.bf16.msra.mxu0 %v702
    %768 = vmatprep.subr.bf16.mxu0 %v705
    %769 = vmatpush1.bf16.msra.mxu0 %v704
    %770 = vmatprep.subr.bf16.mxu0 %v707
    %771 = vmatpush1.bf16.msra.mxu0 %v706
    %772 = vmatprep.subr.bf16.mxu0 %v709
    %773 = vmatpush1.bf16.msra.mxu0 %v708
    %774 = vmatprep.subr.bf16.mxu0 %v711
    %775 = vmatpush1.bf16.msra.mxu0 %v710
    %776 = vmatprep.subr.bf16.mxu0 %v713
    %777 = vmatpush1.bf16.msra.mxu0 %v712
    %778 = vmatprep.subr.bf16.mxu0 %v715
    %779 = vmatpush1.bf16.msra.mxu0 %v714
    %780 = vmatprep.subr.bf16.mxu0 %v717
    %781 = vmatpush1.bf16.msra.mxu0 %v716
    %782 = vmatprep.subr.bf16.mxu0 %v719
    %783 = vmatpush1.bf16.msra.mxu0 %v718
    %784 = vmatprep.subr.bf16.mxu0 %v721
    %785 = vmatpush1.bf16.msra.mxu0 %v720
    %786 = vmatprep.mubr.bf16.mxu0 %v549
    %787 = vmatmul.mubr.bf16.gmra.mrb[0].mxu0 %v548
    %v788 = vpop.f32.mrb[0].mxu0
    %v789 = vadd.f32 %v587, %v788
    %v790 = vpop.f32.mrb[0].mxu0
    %v791 = vadd.f32 %v591, %v790
    %v792 = vpop.f32.mrb[0].mxu0
    %v793 = vpop.f32.mrb[0].mxu0
    %794 = vdwg.mxu0
    %795 = vst [vmem:[#allocation8] sm:$0xff] %v789
    %796 = vst [vmem:[#allocation8 + $0x8] sm:$0xff] %v791
    // Predicated region
    $region34: #{tpu_custom_call.1} parent=1 // pred_check
      _
    $region35: #{tpu_custom_call.1} parent=1 // pred_check_branch
      %798 = sbr.rel (0) target = $region37
    $region36: #{tpu_custom_call.1} parent=1 // pred_region
      %s800 = ssub.s32 256, 256
      %801 = vsyncadd [#allocation4], %s800
      %s803 = sshll.u32 [#allocation8], 4
      %s804 = int_to_ptr.vmem [resolvable:$true] %s803
      %806 = dma.vmem_to_hbm [thread:$0]  %s804, 256, %s5, [#allocation4]
    $region37: #{tpu_custom_call.1} parent=1 // pred_fallthru
      _
    // Predicated region
    $region38: #{tpu_custom_call.1} parent=1 // pred_check
      _
    $region39: #{tpu_custom_call.1} parent=1 // pred_check_branch
      %808 = sbr.rel (0) target = $region41
    $region40: #{tpu_custom_call.1} parent=1 // pred_region
      %809 = dma.done [#allocation4], 256
    $region41: #{tpu_custom_call.1} parent=1 // pred_fallthru
      _
    %810 = vsyncpa [#allocation3], 1
    %811 = vsyncpa [#allocation6], 1
    %812 = vsyncpa [#allocation4], 1

</llo_original>
